<compile_context>
chip_gen: v7x
topology: tpu7x:2x2x1
jax: 0.10.0
libtpu: 0.0.40
codegen_flags: <defaults>
</compile_context>

<pallas_src>
import functools

import jax
import jax.numpy as jnp
from jax.experimental import pallas as pl
from jax.experimental.pallas import tpu as pltpu

AUTOENCODING_DIM = 256  # dim_in = dim_hidden = dim_out = 256, AE_DEPTH = 1


def _round_up(x, m):
    return (x + m - 1) // m * m


def _shared_ae_kernel(x_ref, w1_ref, b1_ref, w2_ref, b2_ref, o_ref, *, skip):
    # Fused 2-layer MLP on the MXU:
    #   h = relu(x @ W1 + b1);  y = h @ W2 + b2  (+ x if skip)
    # bf16 operands feed the MXU; accumulation / bias / ReLU / residual in f32.
    x_mx = x_ref[...].astype(jnp.bfloat16)              # no-op if x is already bf16
    h = jnp.dot(x_mx, w1_ref[...], preferred_element_type=jnp.float32)
    h = jnp.maximum(h + b1_ref[...], 0.0)                # bias + ReLU in f32 (VPU)
    y = jnp.dot(h.astype(jnp.bfloat16), w2_ref[...],
                preferred_element_type=jnp.float32) + b2_ref[...]
    if skip:
        # Residual re-reads x_ref here so the f32 x copy is not live across the
        # matmuls in the skip=False path.
        y = y + x_ref[...].astype(jnp.float32)
    o_ref[...] = y.astype(o_ref.dtype)


def _choose_batch_tile(B, block_b):
    """>=2 balanced, 256-aligned tiles when B > 256 (v7x megacore); 8-aligned
    single tile otherwise.  Default cap (block_b=1024) stays within v5e's
    16 MiB scoped-VMEM default while amortizing the ~0.35 us per-step cost."""
    if B <= 256:
        return _round_up(B, 8)
    return min(block_b, _round_up(pl.cdiv(B, 2), 256))


@functools.partial(jax.jit, static_argnames=("skip", "block_b"))
def shared_autoencoder(x, w1, b1, w2, b2, skip=False, block_b=1024):
    """Pallas implementation of SharedAutoEncoder.forward (eval mode).

    x:  [B, 256] float32 or bfloat16 (output dtype matches input dtype)
    w1: [256, 256], b1: [256]   (first Linear, in->hidden)
    w2: [256, 256], b2: [256]   (second Linear, hidden->out)
    """
    B, D = x.shape

    TB = _choose_batch_tile(B, block_b)
    grid = (pl.cdiv(B, TB),)   # ragged last tile handled by Pallas (masked store)

    # bf16 weights: halve weight DMA bytes, MXU-native on v6e/v7x.
    w1b = w1.astype(jnp.bfloat16)
    w2b = w2.astype(jnp.bfloat16)
    # Biases as [1, D] f32 rows so they broadcast across the batch tile.
    b1r = b1.reshape(1, D).astype(jnp.float32)
    b2r = b2.reshape(1, D).astype(jnp.float32)

    io_itemsize = jnp.dtype(x.dtype).itemsize
    flops = 4 * B * D * D                          # two [TB,D]@[D,D] matmuls per row
    bytes_accessed = (B * D * io_itemsize          # x read
                      + B * D * io_itemsize        # y write
                      + 2 * D * D * 2              # two bf16 weights
                      + 2 * D * 4)                 # two f32 biases

    # Only needed if the caller requests tiles beyond the 1024-row default
    # (v5e's scoped-VMEM default is 16 MiB).
    vmem_limit = None
    if TB > 1024:
        vmem_limit = int(
            4 * TB * D * io_itemsize       # double-buffered x + out tiles
            + 4 * TB * D * 4               # f32 h / y intermediates (headroom)
            + 4 * D * D * 2                # resident bf16 weights (headroom)
            + (2 << 20))

    out = pl.pallas_call(
        functools.partial(_shared_ae_kernel, skip=skip),
        out_shape=jax.ShapeDtypeStruct((B, D), x.dtype),
        grid_spec=pl.GridSpec(
            grid=grid,
            in_specs=[
                pl.BlockSpec((TB, D), lambda i: (i, 0)),   # x: tiled over batch
                pl.BlockSpec((D, D), lambda i: (0, 0)),    # w1: resident block
                pl.BlockSpec((1, D), lambda i: (0, 0)),    # b1
                pl.BlockSpec((D, D), lambda i: (0, 0)),    # w2: resident block
                pl.BlockSpec((1, D), lambda i: (0, 0)),    # b2
            ],
            out_specs=pl.BlockSpec((TB, D), lambda i: (i, 0)),
        ),
        compiler_params=pltpu.CompilerParams(
            dimension_semantics=("parallel",),   # independent batch tiles -> megacore
            vmem_limit_bytes=vmem_limit,
        ),
        cost_estimate=pl.CostEstimate(
            flops=flops, transcendentals=0, bytes_accessed=bytes_accessed),
    )(x, w1b, b1r, w2b, b2r)

    return out


def _reference(x, w1, b1, w2, b2, skip=False):
    xf = x.astype(jnp.float32)
    h = jnp.maximum(xf @ w1 + b1, 0.0)
    y = h @ w2 + b2
    return xf + y if skip else y


if __name__ == "__main__":
    # TODO(synk): training-mode Dropout (stochastic mask + 1/(1-p) scaling) not
    # implemented; eval-mode (identity) semantics are used here.
    key = jax.random.PRNGKey(0)
    k_x, k_w1, k_b1, k_w2, k_b2, k_x2 = jax.random.split(key, 6)

    B, D = 8, AUTOENCODING_DIM  # small batch, module-defined feature dim = 256
    x = jax.random.normal(k_x, (B, D), dtype=jnp.float32)

    # Deterministic init (PyTorch Linear default: U(-1/sqrt(fan_in), 1/sqrt(fan_in)))
    bound = 1.0 / jnp.sqrt(jnp.float32(D))
    w1 = jax.random.uniform(k_w1, (D, D), jnp.float32, -bound, bound)
    b1 = jax.random.uniform(k_b1, (D,), jnp.float32, -bound, bound)
    w2 = jax.random.uniform(k_w2, (D, D), jnp.float32, -bound, bound)
    b2 = jax.random.uniform(k_b2, (D,), jnp.float32, -bound, bound)

    # Small-batch case (single grid step, 8-aligned tile).
    y = shared_autoencoder(x, w1, b1, w2, b2, skip=False)
    y_skip = shared_autoencoder(x, w1, b1, w2, b2, skip=True)
    jax.block_until_ready((y, y_skip))

    y_ref = _reference(x, w1, b1, w2, b2, skip=False)
    y_skip_ref = _reference(x, w1, b1, w2, b2, skip=True)
    assert y.shape == (B, D) and y.dtype == x.dtype
    # bf16 MXU operands -> loosened tolerance vs the f32 reference.
    assert jnp.allclose(y, y_ref, atol=5e-2, rtol=5e-2)
    assert jnp.allclose(y_skip, y_skip_ref, atol=5e-2, rtol=5e-2)

    # Multi-tile ragged case: B=300 -> TB=256, grid=2 (exercises the balanced
    # split for megacore and the masked ragged last tile with no pad/slice).
    B2 = 300
    x2 = jax.random.normal(k_x2, (B2, D), dtype=jnp.float32)
    y2 = shared_autoencoder(x2, w1, b1, w2, b2, skip=False)
    jax.block_until_ready(y2)
    y2_ref = _reference(x2, w1, b1, w2, b2, skip=False)
    assert y2.shape == (B2, D)
    assert jnp.allclose(y2, y2_ref, atol=5e-2, rtol=5e-2)

    # bf16-I/O case: halves the dominant x/y HBM streams when the surrounding
    # model already holds bf16 activations.
    x2_bf = x2.astype(jnp.bfloat16)
    y2_bf = shared_autoencoder(x2_bf, w1, b1, w2, b2, skip=True)
    jax.block_until_ready(y2_bf)
    y2_bf_ref = _reference(x2_bf, w1, b1, w2, b2, skip=True)
    assert y2_bf.dtype == jnp.bfloat16
    assert jnp.allclose(y2_bf.astype(jnp.float32), y2_bf_ref, atol=2e-1, rtol=2e-1)

    print("KERNEL_OK")
</pallas_src>

<mosaic_0001>
module attributes {stable_mosaic.version = 11 : i64} {
  func.func @_shared_ae_kernel(%arg0: i32, %arg1: memref<8x256xf32, #tpu.memory_space<vmem>>, %arg2: memref<256x256xbf16, #tpu.memory_space<vmem>>, %arg3: memref<1x256xf32, #tpu.memory_space<vmem>>, %arg4: memref<256x256xbf16, #tpu.memory_space<vmem>>, %arg5: memref<1x256xf32, #tpu.memory_space<vmem>>, %arg6: memref<8x256xf32, #tpu.memory_space<vmem>>) attributes {dimension_semantics = [#tpu.dimension_semantics<parallel>], iteration_bounds = array<i64: 1>, scalar_prefetch = 0 : i64, scratch_operands = 0 : i64, tpu.core_type = #tpu.core_type<tc>, window_params = [{transform_indices = @transform_0, window_bounds = array<i64: 8, 256>}, {pipeline_mode = #tpu.pipeline_mode<synchronous>, transform_indices = @transform_1, window_bounds = array<i64: 256, 256>}, {pipeline_mode = #tpu.pipeline_mode<synchronous>, transform_indices = @transform_2, window_bounds = array<i64: 1, 256>}, {pipeline_mode = #tpu.pipeline_mode<synchronous>, transform_indices = @transform_3, window_bounds = array<i64: 256, 256>}, {pipeline_mode = #tpu.pipeline_mode<synchronous>, transform_indices = @transform_4, window_bounds = array<i64: 1, 256>}, {transform_indices = @transform_5, window_bounds = array<i64: 8, 256>}]} {
    %c0 = arith.constant 0 : index
    %c0_0 = arith.constant 0 : index
    %0 = vector.load %arg1[%c0, %c0_0] : memref<8x256xf32, #tpu.memory_space<vmem>>, vector<8x256xf32>
    %1 = arith.truncf %0 : vector<8x256xf32> to vector<8x256xbf16>
    %c0_1 = arith.constant 0 : index
    %c0_2 = arith.constant 0 : index
    %2 = vector.load %arg2[%c0_1, %c0_2] : memref<256x256xbf16, #tpu.memory_space<vmem>>, vector<256x256xbf16>
    %cst = arith.constant dense<0.000000e+00> : vector<8x256xf32>
    %3 = tpu.matmul %1, %2, %cst {dimension_numbers = #tpu.dot_dimension_numbers<[1], [0], [0], [1], [0, 0, 1, 1], [], []>} : vector<8x256xbf16>, vector<256x256xbf16>, vector<8x256xf32> -> vector<8x256xf32>
    %c0_3 = arith.constant 0 : index
    %c0_4 = arith.constant 0 : index
    %4 = vector.load %arg3[%c0_3, %c0_4] : memref<1x256xf32, #tpu.memory_space<vmem>>, vector<1x256xf32>
    %5 = vector.broadcast %4 : vector<1x256xf32> to vector<8x256xf32>
    %6 = arith.addf %3, %5 : vector<8x256xf32>
    %cst_5 = arith.constant 0.000000e+00 : f32
    %7 = vector.broadcast %cst_5 : f32 to vector<8x256xf32>
    %8 = arith.maximumf %6, %7 : vector<8x256xf32>
    %9 = arith.truncf %8 : vector<8x256xf32> to vector<8x256xbf16>
    %c0_6 = arith.constant 0 : index
    %c0_7 = arith.constant 0 : index
    %10 = vector.load %arg4[%c0_6, %c0_7] : memref<256x256xbf16, #tpu.memory_space<vmem>>, vector<256x256xbf16>
    %cst_8 = arith.constant dense<0.000000e+00> : vector<8x256xf32>
    %11 = tpu.matmul %9, %10, %cst_8 {dimension_numbers = #tpu.dot_dimension_numbers<[1], [0], [0], [1], [0, 0, 1, 1], [], []>} : vector<8x256xbf16>, vector<256x256xbf16>, vector<8x256xf32> -> vector<8x256xf32>
    %c0_9 = arith.constant 0 : index
    %c0_10 = arith.constant 0 : index
    %12 = vector.load %arg5[%c0_9, %c0_10] : memref<1x256xf32, #tpu.memory_space<vmem>>, vector<1x256xf32>
    %13 = vector.broadcast %12 : vector<1x256xf32> to vector<8x256xf32>
    %14 = arith.addf %11, %13 : vector<8x256xf32>
    %c0_11 = arith.constant 0 : index
    %c0_12 = arith.constant 0 : index
    %15 = vector.load %arg6[%c0_11, %c0_12] : memref<8x256xf32, #tpu.memory_space<vmem>>, vector<8x256xf32>
    tpu.vector_store %arg6[%c0_11, %c0_12], %14 {strides = array<i32>} : memref<8x256xf32, #tpu.memory_space<vmem>>, vector<8x256xf32>,
    return
  }
  func.func @transform_0(%arg0: i32) -> (i32, i32) {
    %c0_i32 = arith.constant 0 : i32
    %c0_i32_0 = arith.constant 0 : i32
    return %arg0, %c0_i32 : i32, i32
  }
  func.func @transform_1(%arg0: i32) -> (i32, i32) {
    %c0_i32 = arith.constant 0 : i32
    %c0_i32_0 = arith.constant 0 : i32
    %c0_i32_1 = arith.constant 0 : i32
    return %c0_i32, %c0_i32_0 : i32, i32
  }
  func.func @transform_2(%arg0: i32) -> (i32, i32) {
    %c0_i32 = arith.constant 0 : i32
    %c0_i32_0 = arith.constant 0 : i32
    %c0_i32_1 = arith.constant 0 : i32
    return %c0_i32, %c0_i32_0 : i32, i32
  }
  func.func @transform_3(%arg0: i32) -> (i32, i32) {
    %c0_i32 = arith.constant 0 : i32
    %c0_i32_0 = arith.constant 0 : i32
    %c0_i32_1 = arith.constant 0 : i32
    return %c0_i32, %c0_i32_0 : i32, i32
  }
  func.func @transform_4(%arg0: i32) -> (i32, i32) {
    %c0_i32 = arith.constant 0 : i32
    %c0_i32_0 = arith.constant 0 : i32
    %c0_i32_1 = arith.constant 0 : i32
    return %c0_i32, %c0_i32_0 : i32, i32
  }
  func.func @transform_5(%arg0: i32) -> (i32, i32) {
    %c0_i32 = arith.constant 0 : i32
    %c0_i32_0 = arith.constant 0 : i32
    return %arg0, %c0_i32 : i32, i32
  }
}

</mosaic_0001>

<llo_original>
// kernel: shared_autoencoder.1
$region0: #{shared_autoencoder.1}
  #allocation0 [shape = 'u32[]', space=smem, size = 0x4, offset = 0x4, fixed_abs, tag = 'smem constant byte address 0x4 - core index']
  #allocation1 [shape = 'u32[144,128]{1,0:T(1,128)}', space=vmem, size = 0x12000, scoped, tag = 'internal scratch']
  %s0 = inlined_call_operand.vmem [shape: f32[8,256], index: 0, kind: input, shape index: {}]
  %s1 = inlined_call_operand.vmem [shape: bf16[256,256], index: 1, kind: input, shape index: {}]
  %s2 = inlined_call_operand.vmem [shape: f32[1,256], index: 2, kind: input, shape index: {}]
  %s3 = inlined_call_operand.vmem [shape: bf16[256,256], index: 3, kind: input, shape index: {}]
  %s4 = inlined_call_operand.vmem [shape: f32[1,256], index: 4, kind: input, shape index: {}]
  %s5 = inlined_call_operand.hbm [shape: f32[8,256], index: 5, kind: output, shape index: {}]
  %s6 = sld [smem:[#allocation0]]
  $region30: #{shared_autoencoder.1} parent=0
    _
  %s8 = ssub.s32 1, %s6
  %s9 = scalar_select 0, %s8, %s6
  $region1: #{shared_autoencoder.1} parent=0
    #allocation2 [shape = 'u8[8192]{0}', space=vmem, size = 0x2000, scoped, tag = 'output window, operand 0, single buffered']
    #allocation3 [shape = 's32[1]{0}', space=sflag, size = 0x4, scoped, tag = 'scoped memory for shared_autoencoder.1']
    %10 = vsyncpa [#allocation3], 0
    // Predicated region
    $region2: #{shared_autoencoder.1} parent=1 // pred_check
      _
    $region3: #{shared_autoencoder.1} parent=1 // pred_check_branch
      %12 = sbr.rel (0) target = $region5
    $region4: #{shared_autoencoder.1} parent=1 // pred_region
      _
    $region5: #{shared_autoencoder.1} parent=1 // pred_fallthru
      _
    // Predicated region
    $region6: #{shared_autoencoder.1} parent=1 // pred_check
      _
    $region7: #{shared_autoencoder.1} parent=1 // pred_check_branch
      %14 = sbr.rel (0) target = $region9
    $region8: #{shared_autoencoder.1} parent=1 // pred_region
      _
    $region9: #{shared_autoencoder.1} parent=1 // pred_fallthru
      _
    // Predicated region
    $region10: #{shared_autoencoder.1} parent=1 // pred_check
      _
    $region11: #{shared_autoencoder.1} parent=1 // pred_check_branch
      %16 = sbr.rel (0) target = $region13
    $region12: #{shared_autoencoder.1} parent=1 // pred_region
      _
    $region13: #{shared_autoencoder.1} parent=1 // pred_fallthru
      _
    // Predicated region
    $region14: #{shared_autoencoder.1} parent=1 // pred_check
      _
    $region15: #{shared_autoencoder.1} parent=1 // pred_check_branch
      %18 = sbr.rel (0) target = $region17
    $region16: #{shared_autoencoder.1} parent=1 // pred_region
      _
    $region17: #{shared_autoencoder.1} parent=1 // pred_fallthru
      _
    // Predicated region
    $region18: #{shared_autoencoder.1} parent=1 // pred_check
      _
    $region19: #{shared_autoencoder.1} parent=1 // pred_check_branch
      %20 = sbr.rel (0) target = $region21
    $region20: #{shared_autoencoder.1} parent=1 // pred_region
      _
    $region21: #{shared_autoencoder.1} parent=1 // pred_fallthru
      _
    %v21 = vld [vmem:[%s0] sm:$0xff]
    %v22 = vld [vmem:[%s0 + $0x8] sm:$0xff]
    %v23 = vpack.c.bf16 %v21, %v21
    %v24 = vpack.c.bf16 %v22, %v22
    %v25 = vld [vmem:[%s1] sm:$0xff]
    %v26 = vld [vmem:[%s1 + $0x8] sm:$0xff]
    %v27 = vld [vmem:[%s1 + $0x10] sm:$0xff]
    %v28 = vld [vmem:[%s1 + $0x18] sm:$0xff]
    %v29 = vld [vmem:[%s1 + $0x20] sm:$0xff]
    %v30 = vld [vmem:[%s1 + $0x28] sm:$0xff]
    %v31 = vld [vmem:[%s1 + $0x30] sm:$0xff]
    %v32 = vld [vmem:[%s1 + $0x38] sm:$0xff]
    %v33 = vld [vmem:[%s1 + $0x40] sm:$0xff]
    %v34 = vld [vmem:[%s1 + $0x48] sm:$0xff]
    %v35 = vld [vmem:[%s1 + $0x50] sm:$0xff]
    %v36 = vld [vmem:[%s1 + $0x58] sm:$0xff]
    %v37 = vld [vmem:[%s1 + $0x60] sm:$0xff]
    %v38 = vld [vmem:[%s1 + $0x68] sm:$0xff]
    %v39 = vld [vmem:[%s1 + $0x70] sm:$0xff]
    %v40 = vld [vmem:[%s1 + $0x78] sm:$0xff]
    %v41 = vld [vmem:[%s1 + $0x80] sm:$0xff]
    %v42 = vld [vmem:[%s1 + $0x88] sm:$0xff]
    %v43 = vld [vmem:[%s1 + $0x90] sm:$0xff]
    %v44 = vld [vmem:[%s1 + $0x98] sm:$0xff]
    %v45 = vld [vmem:[%s1 + $0xa0] sm:$0xff]
    %v46 = vld [vmem:[%s1 + $0xa8] sm:$0xff]
    %v47 = vld [vmem:[%s1 + $0xb0] sm:$0xff]
    %v48 = vld [vmem:[%s1 + $0xb8] sm:$0xff]
    %v49 = vld [vmem:[%s1 + $0xc0] sm:$0xff]
    %v50 = vld [vmem:[%s1 + $0xc8] sm:$0xff]
    %v51 = vld [vmem:[%s1 + $0xd0] sm:$0xff]
    %v52 = vld [vmem:[%s1 + $0xd8] sm:$0xff]
    %v53 = vld [vmem:[%s1 + $0xe0] sm:$0xff]
    %v54 = vld [vmem:[%s1 + $0xe8] sm:$0xff]
    %v55 = vld [vmem:[%s1 + $0xf0] sm:$0xff]
    %v56 = vld [vmem:[%s1 + $0xf8] sm:$0xff]
    %v57 = vld [vmem:[%s2] sm:$0x3]
    %v59 = vlaneseq
    %v60 = vshrl.u32 %v59, 7
    %v61 = vsub.s32 0, %v60
    %v62 = vrot.slane %v57, %v61
    %v63 = vlaneseq
    %v64 = vshrl.u32 %v63, 7
    %v65 = vsub.s32 1, %v64
    %v66 = vrot.slane %v57, %v65
    %v101 = vunpack.c.l.b16 %v25
    %v102 = vunpack.c.h.b16 %v25
    %v103 = vunpack.c.l.b16 %v26
    %v104 = vunpack.c.h.b16 %v26
    %v105 = vunpack.c.l.b16 %v27
    %v106 = vunpack.c.h.b16 %v27
    %v107 = vunpack.c.l.b16 %v28
    %v108 = vunpack.c.h.b16 %v28
    %v109 = vunpack.c.l.b16 %v29
    %v110 = vunpack.c.h.b16 %v29
    %v111 = vunpack.c.l.b16 %v30
    %v112 = vunpack.c.h.b16 %v30
    %v113 = vunpack.c.l.b16 %v31
    %v114 = vunpack.c.h.b16 %v31
    %v115 = vunpack.c.l.b16 %v32
    %v116 = vunpack.c.h.b16 %v32
    %v117 = vunpack.c.l.b16 %v33
    %v118 = vunpack.c.h.b16 %v33
    %v119 = vunpack.c.l.b16 %v34
    %v120 = vunpack.c.h.b16 %v34
    %v121 = vunpack.c.l.b16 %v35
    %v122 = vunpack.c.h.b16 %v35
    %v123 = vunpack.c.l.b16 %v36
    %v124 = vunpack.c.h.b16 %v36
    %v125 = vunpack.c.l.b16 %v37
    %v126 = vunpack.c.h.b16 %v37
    %v127 = vunpack.c.l.b16 %v38
    %v128 = vunpack.c.h.b16 %v38
    %v129 = vunpack.c.l.b16 %v39
    %v130 = vunpack.c.h.b16 %v39
    %v131 = vunpack.c.l.b16 %v40
    %v132 = vunpack.c.h.b16 %v40
    %v133 = vunpack.c.l.b16 %v41
    %v134 = vunpack.c.h.b16 %v41
    %v135 = vunpack.c.l.b16 %v42
    %v136 = vunpack.c.h.b16 %v42
    %v137 = vunpack.c.l.b16 %v43
    %v138 = vunpack.c.h.b16 %v43
    %v139 = vunpack.c.l.b16 %v44
    %v140 = vunpack.c.h.b16 %v44
    %v141 = vunpack.c.l.b16 %v45
    %v142 = vunpack.c.h.b16 %v45
    %v143 = vunpack.c.l.b16 %v46
    %v144 = vunpack.c.h.b16 %v46
    %v145 = vunpack.c.l.b16 %v47
    %v146 = vunpack.c.h.b16 %v47
    %v147 = vunpack.c.l.b16 %v48
    %v148 = vunpack.c.h.b16 %v48
    %v149 = vunpack.c.l.b16 %v49
    %v150 = vunpack.c.h.b16 %v49
    %v151 = vunpack.c.l.b16 %v50
    %v152 = vunpack.c.h.b16 %v50
    %v153 = vunpack.c.l.b16 %v51
    %v154 = vunpack.c.h.b16 %v51
    %v155 = vunpack.c.l.b16 %v52
    %v156 = vunpack.c.h.b16 %v52
    %v157 = vunpack.c.l.b16 %v53
    %v158 = vunpack.c.h.b16 %v53
    %v159 = vunpack.c.l.b16 %v54
    %v160 = vunpack.c.h.b16 %v54
    %v161 = vunpack.c.l.b16 %v55
    %v162 = vunpack.c.h.b16 %v55
    %v163 = vunpack.c.l.b16 %v56
    %v164 = vunpack.c.h.b16 %v56
    %v165 = vpack.c.b16 %v103, %v101
    %v166 = vpack.c.b16 %v104, %v102
    %v167 = vpack.c.b16 %v107, %v105
    %v168 = vpack.c.b16 %v108, %v106
    %v169 = vpack.c.b16 %v111, %v109
    %v170 = vpack.c.b16 %v112, %v110
    %v171 = vpack.c.b16 %v115, %v113
    %v172 = vpack.c.b16 %v116, %v114
    %v173 = vpack.c.b16 %v119, %v117
    %v174 = vpack.c.b16 %v120, %v118
    %v175 = vpack.c.b16 %v123, %v121
    %v176 = vpack.c.b16 %v124, %v122
    %v177 = vpack.c.b16 %v127, %v125
    %v178 = vpack.c.b16 %v128, %v126
    %v179 = vpack.c.b16 %v131, %v129
    %v180 = vpack.c.b16 %v132, %v130
    %v181 = vpack.c.b16 %v135, %v133
    %v182 = vpack.c.b16 %v136, %v134
    %v183 = vpack.c.b16 %v139, %v137
    %v184 = vpack.c.b16 %v140, %v138
    %v185 = vpack.c.b16 %v143, %v141
    %v186 = vpack.c.b16 %v144, %v142
    %v187 = vpack.c.b16 %v147, %v145
    %v188 = vpack.c.b16 %v148, %v146
    %v189 = vpack.c.b16 %v151, %v149
    %v190 = vpack.c.b16 %v152, %v150
    %v191 = vpack.c.b16 %v155, %v153
    %v192 = vpack.c.b16 %v156, %v154
    %v193 = vpack.c.b16 %v159, %v157
    %v194 = vpack.c.b16 %v160, %v158
    %v195 = vpack.c.b16 %v163, %v161
    %v196 = vpack.c.b16 %v164, %v162
    %229 = vmatprep.subr.bf16.mxu0 %v166
    %230 = vmatpush1.bf16.msra.mxu0 %v165
    %231 = vmatprep.subr.bf16.mxu0 %v168
    %232 = vmatpush1.bf16.msra.mxu0 %v167
    %233 = vmatprep.subr.bf16.mxu0 %v170
    %234 = vmatpush1.bf16.msra.mxu0 %v169
    %235 = vmatprep.subr.bf16.mxu0 %v172
    %236 = vmatpush1.bf16.msra.mxu0 %v171
    %237 = vmatprep.subr.bf16.mxu0 %v174
    %238 = vmatpush1.bf16.msra.mxu0 %v173
    %239 = vmatprep.subr.bf16.mxu0 %v176
    %240 = vmatpush1.bf16.msra.mxu0 %v175
    %241 = vmatprep.subr.bf16.mxu0 %v178
    %242 = vmatpush1.bf16.msra.mxu0 %v177
    %243 = vmatprep.subr.bf16.mxu0 %v180
    %244 = vmatpush1.bf16.msra.mxu0 %v179
    %245 = vmatprep.subr.bf16.mxu0 %v182
    %246 = vmatpush1.bf16.msra.mxu0 %v181
    %247 = vmatprep.subr.bf16.mxu0 %v184
    %248 = vmatpush1.bf16.msra.mxu0 %v183
    %249 = vmatprep.subr.bf16.mxu0 %v186
    %250 = vmatpush1.bf16.msra.mxu0 %v185
    %251 = vmatprep.subr.bf16.mxu0 %v188
    %252 = vmatpush1.bf16.msra.mxu0 %v187
    %253 = vmatprep.subr.bf16.mxu0 %v190
    %254 = vmatpush1.bf16.msra.mxu0 %v189
    %255 = vmatprep.subr.bf16.mxu0 %v192
    %256 = vmatpush1.bf16.msra.mxu0 %v191
    %257 = vmatprep.subr.bf16.mxu0 %v194
    %258 = vmatpush1.bf16.msra.mxu0 %v193
    %259 = vmatprep.subr.bf16.mxu0 %v196
    %260 = vmatpush1.bf16.msra.mxu0 %v195
    %261 = vmatprep.mubr.bf16.mxu0 %v24
    %262 = vmatmul.mubr.bf16.gmra.mrb[0].mxu0 %v23
    %v263 = vpop.f32.mrb[0].mxu0
    %v264 = vadd.f32 %v62, %v263
    %v265 = vpop.f32.mrb[0].mxu0
    %v266 = vadd.f32 %v66, %v265
    %v267 = vpop.f32.mrb[0].mxu0
    %v268 = vpop.f32.mrb[0].mxu0
    %269 = vdwg.mxu0
    %v270 = vmax.f32 %v264, 0.0
    %v271 = vmax.f32 %v266, 0.0
    %v272 = vpack.c.bf16 %v270, %v270
    %v273 = vpack.c.bf16 %v271, %v271
    %v274 = vld [vmem:[%s3] sm:$0xff]
    %v275 = vld [vmem:[%s3 + $0x8] sm:$0xff]
    %v276 = vld [vmem:[%s3 + $0x10] sm:$0xff]
    %v277 = vld [vmem:[%s3 + $0x18] sm:$0xff]
    %v278 = vld [vmem:[%s3 + $0x20] sm:$0xff]
    %v279 = vld [vmem:[%s3 + $0x28] sm:$0xff]
    %v280 = vld [vmem:[%s3 + $0x30] sm:$0xff]
    %v281 = vld [vmem:[%s3 + $0x38] sm:$0xff]
    %v282 = vld [vmem:[%s3 + $0x40] sm:$0xff]
    %v283 = vld [vmem:[%s3 + $0x48] sm:$0xff]
    %v284 = vld [vmem:[%s3 + $0x50] sm:$0xff]
    %v285 = vld [vmem:[%s3 + $0x58] sm:$0xff]
    %v286 = vld [vmem:[%s3 + $0x60] sm:$0xff]
    %v287 = vld [vmem:[%s3 + $0x68] sm:$0xff]
    %v288 = vld [vmem:[%s3 + $0x70] sm:$0xff]
    %v289 = vld [vmem:[%s3 + $0x78] sm:$0xff]
    %v290 = vld [vmem:[%s3 + $0x80] sm:$0xff]
    %v291 = vld [vmem:[%s3 + $0x88] sm:$0xff]
    %v292 = vld [vmem:[%s3 + $0x90] sm:$0xff]
    %v293 = vld [vmem:[%s3 + $0x98] sm:$0xff]
    %v294 = vld [vmem:[%s3 + $0xa0] sm:$0xff]
    %v295 = vld [vmem:[%s3 + $0xa8] sm:$0xff]
    %v296 = vld [vmem:[%s3 + $0xb0] sm:$0xff]
    %v297 = vld [vmem:[%s3 + $0xb8] sm:$0xff]
    %v298 = vld [vmem:[%s3 + $0xc0] sm:$0xff]
    %v299 = vld [vmem:[%s3 + $0xc8] sm:$0xff]
    %v300 = vld [vmem:[%s3 + $0xd0] sm:$0xff]
    %v301 = vld [vmem:[%s3 + $0xd8] sm:$0xff]
    %v302 = vld [vmem:[%s3 + $0xe0] sm:$0xff]
    %v303 = vld [vmem:[%s3 + $0xe8] sm:$0xff]
    %v304 = vld [vmem:[%s3 + $0xf0] sm:$0xff]
    %v305 = vld [vmem:[%s3 + $0xf8] sm:$0xff]
    %v306 = vld [vmem:[%s4] sm:$0x3]
    %v308 = vlaneseq
    %v309 = vshrl.u32 %v308, 7
    %v310 = vsub.s32 0, %v309
    %v311 = vrot.slane %v306, %v310
    %v312 = vlaneseq
    %v313 = vshrl.u32 %v312, 7
    %v314 = vsub.s32 1, %v313
    %v315 = vrot.slane %v306, %v314
    %v350 = vunpack.c.l.b16 %v274
    %v351 = vunpack.c.h.b16 %v274
    %v352 = vunpack.c.l.b16 %v275
    %v353 = vunpack.c.h.b16 %v275
    %v354 = vunpack.c.l.b16 %v276
    %v355 = vunpack.c.h.b16 %v276
    %v356 = vunpack.c.l.b16 %v277
    %v357 = vunpack.c.h.b16 %v277
    %v358 = vunpack.c.l.b16 %v278
    %v359 = vunpack.c.h.b16 %v278
    %v360 = vunpack.c.l.b16 %v279
    %v361 = vunpack.c.h.b16 %v279
    %v362 = vunpack.c.l.b16 %v280
    %v363 = vunpack.c.h.b16 %v280
    %v364 = vunpack.c.l.b16 %v281
    %v365 = vunpack.c.h.b16 %v281
    %v366 = vunpack.c.l.b16 %v282
    %v367 = vunpack.c.h.b16 %v282
    %v368 = vunpack.c.l.b16 %v283
    %v369 = vunpack.c.h.b16 %v283
    %v370 = vunpack.c.l.b16 %v284
    %v371 = vunpack.c.h.b16 %v284
    %v372 = vunpack.c.l.b16 %v285
    %v373 = vunpack.c.h.b16 %v285
    %v374 = vunpack.c.l.b16 %v286
    %v375 = vunpack.c.h.b16 %v286
    %v376 = vunpack.c.l.b16 %v287
    %v377 = vunpack.c.h.b16 %v287
    %v378 = vunpack.c.l.b16 %v288
    %v379 = vunpack.c.h.b16 %v288
    %v380 = vunpack.c.l.b16 %v289
    %v381 = vunpack.c.h.b16 %v289
    %v382 = vunpack.c.l.b16 %v290
    %v383 = vunpack.c.h.b16 %v290
    %v384 = vunpack.c.l.b16 %v291
    %v385 = vunpack.c.h.b16 %v291
    %v386 = vunpack.c.l.b16 %v292
    %v387 = vunpack.c.h.b16 %v292
    %v388 = vunpack.c.l.b16 %v293
    %v389 = vunpack.c.h.b16 %v293
    %v390 = vunpack.c.l.b16 %v294
    %v391 = vunpack.c.h.b16 %v294
    %v392 = vunpack.c.l.b16 %v295
    %v393 = vunpack.c.h.b16 %v295
    %v394 = vunpack.c.l.b16 %v296
    %v395 = vunpack.c.h.b16 %v296
    %v396 = vunpack.c.l.b16 %v297
    %v397 = vunpack.c.h.b16 %v297
    %v398 = vunpack.c.l.b16 %v298
    %v399 = vunpack.c.h.b16 %v298
    %v400 = vunpack.c.l.b16 %v299
    %v401 = vunpack.c.h.b16 %v299
    %v402 = vunpack.c.l.b16 %v300
    %v403 = vunpack.c.h.b16 %v300
    %v404 = vunpack.c.l.b16 %v301
    %v405 = vunpack.c.h.b16 %v301
    %v406 = vunpack.c.l.b16 %v302
    %v407 = vunpack.c.h.b16 %v302
    %v408 = vunpack.c.l.b16 %v303
    %v409 = vunpack.c.h.b16 %v303
    %v410 = vunpack.c.l.b16 %v304
    %v411 = vunpack.c.h.b16 %v304
    %v412 = vunpack.c.l.b16 %v305
    %v413 = vunpack.c.h.b16 %v305
    %v414 = vpack.c.b16 %v352, %v350
    %v415 = vpack.c.b16 %v353, %v351
    %v416 = vpack.c.b16 %v356, %v354
    %v417 = vpack.c.b16 %v357, %v355
    %v418 = vpack.c.b16 %v360, %v358
    %v419 = vpack.c.b16 %v361, %v359
    %v420 = vpack.c.b16 %v364, %v362
    %v421 = vpack.c.b16 %v365, %v363
    %v422 = vpack.c.b16 %v368, %v366
    %v423 = vpack.c.b16 %v369, %v367
    %v424 = vpack.c.b16 %v372, %v370
    %v425 = vpack.c.b16 %v373, %v371
    %v426 = vpack.c.b16 %v376, %v374
    %v427 = vpack.c.b16 %v377, %v375
    %v428 = vpack.c.b16 %v380, %v378
    %v429 = vpack.c.b16 %v381, %v379
    %v430 = vpack.c.b16 %v384, %v382
    %v431 = vpack.c.b16 %v385, %v383
    %v432 = vpack.c.b16 %v388, %v386
    %v433 = vpack.c.b16 %v389, %v387
    %v434 = vpack.c.b16 %v392, %v390
    %v435 = vpack.c.b16 %v393, %v391
    %v436 = vpack.c.b16 %v396, %v394
    %v437 = vpack.c.b16 %v397, %v395
    %v438 = vpack.c.b16 %v400, %v398
    %v439 = vpack.c.b16 %v401, %v399
    %v440 = vpack.c.b16 %v404, %v402
    %v441 = vpack.c.b16 %v405, %v403
    %v442 = vpack.c.b16 %v408, %v406
    %v443 = vpack.c.b16 %v409, %v407
    %v444 = vpack.c.b16 %v412, %v410
    %v445 = vpack.c.b16 %v413, %v411
    %478 = vmatprep.subr.bf16.mxu0 %v415
    %479 = vmatpush1.bf16.msra.mxu0 %v414
    %480 = vmatprep.subr.bf16.mxu0 %v417
    %481 = vmatpush1.bf16.msra.mxu0 %v416
    %482 = vmatprep.subr.bf16.mxu0 %v419
    %483 = vmatpush1.bf16.msra.mxu0 %v418
    %484 = vmatprep.subr.bf16.mxu0 %v421
    %485 = vmatpush1.bf16.msra.mxu0 %v420
    %486 = vmatprep.subr.bf16.mxu0 %v423
    %487 = vmatpush1.bf16.msra.mxu0 %v422
    %488 = vmatprep.subr.bf16.mxu0 %v425
    %489 = vmatpush1.bf16.msra.mxu0 %v424
    %490 = vmatprep.subr.bf16.mxu0 %v427
    %491 = vmatpush1.bf16.msra.mxu0 %v426
    %492 = vmatprep.subr.bf16.mxu0 %v429
    %493 = vmatpush1.bf16.msra.mxu0 %v428
    %494 = vmatprep.subr.bf16.mxu0 %v431
    %495 = vmatpush1.bf16.msra.mxu0 %v430
    %496 = vmatprep.subr.bf16.mxu0 %v433
    %497 = vmatpush1.bf16.msra.mxu0 %v432
    %498 = vmatprep.subr.bf16.mxu0 %v435
    %499 = vmatpush1.bf16.msra.mxu0 %v434
    %500 = vmatprep.subr.bf16.mxu0 %v437
    %501 = vmatpush1.bf16.msra.mxu0 %v436
    %502 = vmatprep.subr.bf16.mxu0 %v439
    %503 = vmatpush1.bf16.msra.mxu0 %v438
    %504 = vmatprep.subr.bf16.mxu0 %v441
    %505 = vmatpush1.bf16.msra.mxu0 %v440
    %506 = vmatprep.subr.bf16.mxu0 %v443
    %507 = vmatpush1.bf16.msra.mxu0 %v442
    %508 = vmatprep.subr.bf16.mxu0 %v445
    %509 = vmatpush1.bf16.msra.mxu0 %v444
    %510 = vmatprep.mubr.bf16.mxu0 %v273
    %511 = vmatmul.mubr.bf16.gmra.mrb[0].mxu0 %v272
    %v512 = vpop.f32.mrb[0].mxu0
    %v513 = vadd.f32 %v311, %v512
    %v514 = vpop.f32.mrb[0].mxu0
    %v515 = vadd.f32 %v315, %v514
    %v516 = vpop.f32.mrb[0].mxu0
    %v517 = vpop.f32.mrb[0].mxu0
    %518 = vdwg.mxu0
    %519 = vst [vmem:[#allocation2] sm:$0xff] %v513
    %520 = vst [vmem:[#allocation2 + $0x8] sm:$0xff] %v515
    // Predicated region
    $region22: #{shared_autoencoder.1} parent=1 // pred_check
      _
    $region23: #{shared_autoencoder.1} parent=1 // pred_check_branch
      %522 = sbr.rel (0) target = $region25
    $region24: #{shared_autoencoder.1} parent=1 // pred_region
      %s524 = ssub.s32 256, 256
      %525 = vsyncadd [#allocation3], %s524
      %s527 = sshll.u32 [#allocation2], 4
      %s528 = int_to_ptr.vmem [resolvable:$true] %s527
      %530 = dma.vmem_to_hbm [thread:$0]  %s528, 256, %s5, [#allocation3]
    $region25: #{shared_autoencoder.1} parent=1 // pred_fallthru
      _
    // Predicated region
    $region26: #{shared_autoencoder.1} parent=1 // pred_check
      _
    $region27: #{shared_autoencoder.1} parent=1 // pred_check_branch
      %532 = sbr.rel (0) target = $region29
    $region28: #{shared_autoencoder.1} parent=1 // pred_region
      %533 = dma.done [#allocation3], 256
    $region29: #{shared_autoencoder.1} parent=1 // pred_fallthru
      _
    %534 = vsyncpa [#allocation3], 1

</llo_original>
